<compile_context>
chip_gen: v5e
topology: v5e:2x2
jax: 0.10.0
libtpu: 0.0.40
codegen_flags: <defaults>
</compile_context>

<pallas_src>
import functools

import jax
import jax.numpy as jnp
from jax.experimental import pallas as pl
from jax.experimental.pallas import tpu as pltpu


def _mha_kernel(x_ref, wqkv_ref, wp_ref, bp_ref, o_ref, *, bb, seq, heads, hd):
    # x_ref:    (bb*seq, C)      current batch tile, rows flattened
    # wqkv_ref: (C, 3*heads*hd)  fused, pre-transposed q|k|v projection weights
    # wp_ref:   (heads*hd, C)    pre-transposed output-projection weight
    # bp_ref:   (1, C)           output-projection bias
    # o_ref:    (bb*seq, C)
    hh = heads * hd
    x = x_ref[...]

    # One fused QKV projection: a single MXU dot (f32 accumulation), instead
    # of three narrow dots / three weight DMAs.
    qkv = jnp.dot(x, wqkv_ref[...], preferred_element_type=jnp.float32)

    def to_groups(col0):
        # (bb*seq, 3*hh) columns [col0, col0+hh) -> (heads*bb, seq, hd),
        # group g = h*bb + b.  Built from per-head lane slices plus
        # major-dim reshape/concat only (no sublane transposes, no big stack).
        pieces = [
            qkv[:, col0 + h * hd: col0 + (h + 1) * hd].reshape(bb, seq, hd)
            for h in range(heads)
        ]
        return jnp.concatenate(pieces, axis=0)

    # Scale q right after the projection (cheaper than scaling the scores).
    q3 = to_groups(0) * (hd ** -0.5)       # (G, seq, hd)
    k3 = to_groups(hh)
    v3 = to_groups(2 * hh)

    # Batched attention over the merged (head, batch) group axis; contraction
    # is over the trailing dim so no operand transposes are materialized.
    s = jnp.einsum('gqd,gkd->gqk', q3, k3, preferred_element_type=jnp.float32)
    m = jnp.max(s, axis=-1, keepdims=True)
    e = jnp.exp(s - m)
    p = e / jnp.sum(e, axis=-1, keepdims=True)          # exact softmax
    o3 = jnp.einsum('gqk,gkd->gqd', p.astype(v3.dtype), v3,
                    preferred_element_type=jnp.float32)  # (G, seq, hd)

    # Reassemble the natural (rows, heads*hd) lane layout (leading-dim slices
    # + one lane concat), then ONE lane-dense output-projection dot + bias.
    o2 = jnp.concatenate(
        [o3[h * bb:(h + 1) * bb].reshape(bb * seq, hd) for h in range(heads)],
        axis=-1)                                         # (bb*seq, hh)
    out = jnp.dot(o2, wp_ref[...], preferred_element_type=jnp.float32)
    out = out + bp_ref[...]
    o_ref[...] = out.astype(o_ref.dtype)


def multi_head_attention(x, wq, wk, wv, w_proj, b_proj, *, batch_block=None):
    """x: (B, T, C); wq/wk/wv: (H, hs, C) (PyTorch nn.Linear weight layout);
    w_proj: (C, H*hs); b_proj: (C,)."""
    B, T, C = x.shape
    H, hs, _ = wq.shape
    HH = H * hs

    if batch_block is None:
        # Single grid step for small problems: per-step overhead (~0.35us /
        # ~600 cycles) dwarfs a few-KiB step, and on v5e/v6e the grid is a
        # serial loop anyway.  Only split once the row slab gets large, then
        # target ~512-row slabs (measured near HBM roofline at that size).
        batch_block = B
        if B * T > 1024:
            target = max(1, 512 // T)
            for cand in range(min(target, B), 0, -1):
                if B % cand == 0:
                    batch_block = cand
                    break
    assert B % batch_block == 0
    num_steps = B // batch_block

    # Host-side (free XLA) weight layout work, done once, not per grid step:
    #   * Q/K/V fused into one pre-transposed (C, 3*H*hs) matrix.
    #   * Output projection pre-transposed to (H*hs, C) (no in-kernel .T and
    #     no per-batch jnp.tile of projection weights).
    wq_t = jnp.transpose(wq.reshape(HH, C))              # (C, HH)
    wk_t = jnp.transpose(wk.reshape(HH, C))
    wv_t = jnp.transpose(wv.reshape(HH, C))
    wqkv = jnp.concatenate([wq_t, wk_t, wv_t], axis=1)   # (C, 3*HH)
    wp_t = jnp.transpose(w_proj)                         # (HH, C)
    bp = b_proj.reshape(1, C)
    x2 = x.reshape(B * T, C)                             # 2-D row slab

    kernel = functools.partial(_mha_kernel, bb=batch_block, seq=T,
                               heads=H, hd=hs)

    out2 = pl.pallas_call(
        kernel,
        out_shape=jax.ShapeDtypeStruct((B * T, C), x.dtype),
        grid_spec=pltpu.PrefetchScalarGridSpec(
            num_scalar_prefetch=0,
            grid=(num_steps,),
            in_specs=[
                pl.BlockSpec((batch_block * T, C), lambda i: (i, 0)),
                pl.BlockSpec((C, 3 * HH), lambda i: (0, 0)),
                pl.BlockSpec((HH, C), lambda i: (0, 0)),
                pl.BlockSpec((1, C), lambda i: (0, 0)),
            ],
            out_specs=pl.BlockSpec((batch_block * T, C), lambda i: (i, 0)),
        ),
        compiler_params=pltpu.CompilerParams(
            dimension_semantics=("parallel",)),
    )(x2, wqkv, wp_t, bp)
    return out2.reshape(B, T, C)


def multi_head_attention_ref(x, wq, wk, wv, w_proj, b_proj):
    """Pure-JAX reference mirroring the PyTorch forward exactly."""
    H, hs, _ = wq.shape
    head_outs = []
    for h in range(H):
        q = x @ wq[h].T
        k = x @ wk[h].T
        v = x @ wv[h].T
        wei = (q @ jnp.swapaxes(k, -2, -1)) * (k.shape[-1] ** (-0.5))
        wei = jax.nn.softmax(wei, axis=-1)
        head_outs.append(wei @ v)
    cat = jnp.concatenate(head_outs, axis=-1)
    return cat @ w_proj.T + b_proj


if __name__ == "__main__":
    # Small shapes consistent with the module (block_size = T = 8).
    B, T = 2, 8
    n_embd = 32
    num_heads = 4
    head_size = 8

    key = jax.random.PRNGKey(0)
    kx, kq, kk, kv, kp, kb = jax.random.split(key, 6)

    x = jax.random.normal(kx, (B, T, n_embd), dtype=jnp.float32)

    # Deterministic synthetic parameters (PyTorch nn.Linear weight layout).
    wq = 0.1 * jax.random.normal(kq, (num_heads, head_size, n_embd), jnp.float32)
    wk = 0.1 * jax.random.normal(kk, (num_heads, head_size, n_embd), jnp.float32)
    wv = 0.1 * jax.random.normal(kv, (num_heads, head_size, n_embd), jnp.float32)
    w_proj = 0.1 * jax.random.normal(kp, (n_embd, num_heads * head_size), jnp.float32)
    b_proj = 0.1 * jax.random.normal(kb, (n_embd,), jnp.float32)

    out = multi_head_attention(x, wq, wk, wv, w_proj, b_proj)
    out = jax.block_until_ready(out)

    ref = multi_head_attention_ref(x, wq, wk, wv, w_proj, b_proj)
    assert out.shape == (B, T, n_embd)
    # Exact softmax + f32 accumulation -> tight tolerances.
    assert jnp.allclose(out, ref, atol=1e-4, rtol=1e-4), "mismatch vs reference"

    print("KERNEL_OK")
</pallas_src>

<mosaic_0001>
module attributes {stable_mosaic.version = 11 : i64} {
  func.func @_mha_kernel(%arg0: i32, %arg1: memref<16x32xf32, #tpu.memory_space<vmem>>, %arg2: memref<32x96xf32, #tpu.memory_space<vmem>>, %arg3: memref<32x32xf32, #tpu.memory_space<vmem>>, %arg4: memref<1x32xf32, #tpu.memory_space<vmem>>, %arg5: memref<16x32xf32, #tpu.memory_space<vmem>>) attributes {dimension_semantics = [#tpu.dimension_semantics<parallel>], iteration_bounds = array<i64: 1>, scalar_prefetch = 0 : i64, scratch_operands = 0 : i64, tpu.core_type = #tpu.core_type<tc>, window_params = [{transform_indices = @transform_0, window_bounds = array<i64: 16, 32>}, {pipeline_mode = #tpu.pipeline_mode<synchronous>, transform_indices = @transform_1, window_bounds = array<i64: 32, 96>}, {pipeline_mode = #tpu.pipeline_mode<synchronous>, transform_indices = @transform_2, window_bounds = array<i64: 32, 32>}, {pipeline_mode = #tpu.pipeline_mode<synchronous>, transform_indices = @transform_3, window_bounds = array<i64: 1, 32>}, {transform_indices = @transform_4, window_bounds = array<i64: 16, 32>}]} {
    %c0 = arith.constant 0 : index
    %c0_0 = arith.constant 0 : index
    %0 = vector.load %arg1[%c0, %c0_0] : memref<16x32xf32, #tpu.memory_space<vmem>>, vector<16x32xf32>
    %c0_1 = arith.constant 0 : index
    %c0_2 = arith.constant 0 : index
    %1 = vector.load %arg2[%c0_1, %c0_2] : memref<32x96xf32, #tpu.memory_space<vmem>>, vector<32x96xf32>
    %cst = arith.constant dense<0.000000e+00> : vector<16x96xf32>
    %2 = tpu.matmul %0, %1, %cst {dimension_numbers = #tpu.dot_dimension_numbers<[1], [0], [0], [1], [0, 0, 1, 1], [], []>} : vector<16x32xf32>, vector<32x96xf32>, vector<16x96xf32> -> vector<16x96xf32>
    %3 = vector.extract_strided_slice %2 {offsets = [0, 0], sizes = [16, 8], strides = [1, 1]} : vector<16x96xf32> to vector<16x8xf32>
    %4 = vector.shape_cast %3 : vector<16x8xf32> to vector<2x8x8xf32>
    %5 = vector.extract_strided_slice %2 {offsets = [0, 8], sizes = [16, 8], strides = [1, 1]} : vector<16x96xf32> to vector<16x8xf32>
    %6 = vector.shape_cast %5 : vector<16x8xf32> to vector<2x8x8xf32>
    %7 = vector.extract_strided_slice %2 {offsets = [0, 16], sizes = [16, 8], strides = [1, 1]} : vector<16x96xf32> to vector<16x8xf32>
    %8 = vector.shape_cast %7 : vector<16x8xf32> to vector<2x8x8xf32>
    %9 = vector.extract_strided_slice %2 {offsets = [0, 24], sizes = [16, 8], strides = [1, 1]} : vector<16x96xf32> to vector<16x8xf32>
    %10 = vector.shape_cast %9 : vector<16x8xf32> to vector<2x8x8xf32>
    %11 = tpu.concatenate %4, %6, %8, %10 in 0 : vector<2x8x8xf32>, vector<2x8x8xf32>, vector<2x8x8xf32>, vector<2x8x8xf32> -> vector<8x8x8xf32>
    %cst_3 = arith.constant 0.353553385 : f32
    %12 = vector.broadcast %cst_3 : f32 to vector<8x8x8xf32>
    %13 = arith.mulf %11, %12 : vector<8x8x8xf32>
    %14 = vector.extract_strided_slice %2 {offsets = [0, 32], sizes = [16, 8], strides = [1, 1]} : vector<16x96xf32> to vector<16x8xf32>
    %15 = vector.shape_cast %14 : vector<16x8xf32> to vector<2x8x8xf32>
    %16 = vector.extract_strided_slice %2 {offsets = [0, 40], sizes = [16, 8], strides = [1, 1]} : vector<16x96xf32> to vector<16x8xf32>
    %17 = vector.shape_cast %16 : vector<16x8xf32> to vector<2x8x8xf32>
    %18 = vector.extract_strided_slice %2 {offsets = [0, 48], sizes = [16, 8], strides = [1, 1]} : vector<16x96xf32> to vector<16x8xf32>
    %19 = vector.shape_cast %18 : vector<16x8xf32> to vector<2x8x8xf32>
    %20 = vector.extract_strided_slice %2 {offsets = [0, 56], sizes = [16, 8], strides = [1, 1]} : vector<16x96xf32> to vector<16x8xf32>
    %21 = vector.shape_cast %20 : vector<16x8xf32> to vector<2x8x8xf32>
    %22 = tpu.concatenate %15, %17, %19, %21 in 0 : vector<2x8x8xf32>, vector<2x8x8xf32>, vector<2x8x8xf32>, vector<2x8x8xf32> -> vector<8x8x8xf32>
    %23 = vector.extract_strided_slice %2 {offsets = [0, 64], sizes = [16, 8], strides = [1, 1]} : vector<16x96xf32> to vector<16x8xf32>
    %24 = vector.shape_cast %23 : vector<16x8xf32> to vector<2x8x8xf32>
    %25 = vector.extract_strided_slice %2 {offsets = [0, 72], sizes = [16, 8], strides = [1, 1]} : vector<16x96xf32> to vector<16x8xf32>
    %26 = vector.shape_cast %25 : vector<16x8xf32> to vector<2x8x8xf32>
    %27 = vector.extract_strided_slice %2 {offsets = [0, 80], sizes = [16, 8], strides = [1, 1]} : vector<16x96xf32> to vector<16x8xf32>
    %28 = vector.shape_cast %27 : vector<16x8xf32> to vector<2x8x8xf32>
    %29 = vector.extract_strided_slice %2 {offsets = [0, 88], sizes = [16, 8], strides = [1, 1]} : vector<16x96xf32> to vector<16x8xf32>
    %30 = vector.shape_cast %29 : vector<16x8xf32> to vector<2x8x8xf32>
    %31 = tpu.concatenate %24, %26, %28, %30 in 0 : vector<2x8x8xf32>, vector<2x8x8xf32>, vector<2x8x8xf32>, vector<2x8x8xf32> -> vector<8x8x8xf32>
    "tpu.trace_start"() <{level = 10 : i32, message = "gqd,gkd->gqk"}> : () -> ()
    %cst_4 = arith.constant dense<0.000000e+00> : vector<8x8x8xf32>
    %32 = tpu.matmul %13, %22, %cst_4 {dimension_numbers = #tpu.dot_dimension_numbers<[2], [2], [1], [1], [0, 0, 0, 1, 1, 1], [0], [0]>} : vector<8x8x8xf32>, vector<8x8x8xf32>, vector<8x8x8xf32> -> vector<8x8x8xf32>
    "tpu.trace_stop"() : () -> ()
    %cst_5 = arith.constant dense<0xFF800000> : vector<8x8xf32>
    %33 = vector.multi_reduction <maximumf>, %32, %cst_5 [2] : vector<8x8x8xf32> to vector<8x8xf32>
    %34 = vector.shape_cast %33 : vector<8x8xf32> to vector<8x8x1xf32>
    %35 = vector.broadcast %34 : vector<8x8x1xf32> to vector<8x8x8xf32>
    %36 = arith.subf %32, %35 : vector<8x8x8xf32>
    %37 = math.exp %36 : vector<8x8x8xf32>
    %cst_6 = arith.constant dense<0.000000e+00> : vector<8x8xf32>
    %38 = vector.multi_reduction <add>, %37, %cst_6 [2] : vector<8x8x8xf32> to vector<8x8xf32>
    %39 = vector.shape_cast %38 : vector<8x8xf32> to vector<8x8x1xf32>
    %40 = vector.broadcast %39 : vector<8x8x1xf32> to vector<8x8x8xf32>
    %41 = arith.divf %37, %40 : vector<8x8x8xf32>
    "tpu.trace_start"() <{level = 10 : i32, message = "gqk,gkd->gqd"}> : () -> ()
    %cst_7 = arith.constant dense<0.000000e+00> : vector<8x8x8xf32>
    %42 = tpu.matmul %41, %31, %cst_7 {dimension_numbers = #tpu.dot_dimension_numbers<[2], [1], [1], [2], [0, 0, 0, 1, 1, 2], [0], [0]>} : vector<8x8x8xf32>, vector<8x8x8xf32>, vector<8x8x8xf32> -> vector<8x8x8xf32>
    "tpu.trace_stop"() : () -> ()
    %43 = vector.extract_strided_slice %42 {offsets = [0, 0, 0], sizes = [2, 8, 8], strides = [1, 1, 1]} : vector<8x8x8xf32> to vector<2x8x8xf32>
    %44 = vector.shape_cast %43 : vector<2x8x8xf32> to vector<16x8xf32>
    %45 = vector.extract_strided_slice %42 {offsets = [2, 0, 0], sizes = [2, 8, 8], strides = [1, 1, 1]} : vector<8x8x8xf32> to vector<2x8x8xf32>
    %46 = vector.shape_cast %45 : vector<2x8x8xf32> to vector<16x8xf32>
    %47 = vector.extract_strided_slice %42 {offsets = [4, 0, 0], sizes = [2, 8, 8], strides = [1, 1, 1]} : vector<8x8x8xf32> to vector<2x8x8xf32>
    %48 = vector.shape_cast %47 : vector<2x8x8xf32> to vector<16x8xf32>
    %49 = vector.extract_strided_slice %42 {offsets = [6, 0, 0], sizes = [2, 8, 8], strides = [1, 1, 1]} : vector<8x8x8xf32> to vector<2x8x8xf32>
    %50 = vector.shape_cast %49 : vector<2x8x8xf32> to vector<16x8xf32>
    %51 = tpu.concatenate %44, %46, %48, %50 in 1 : vector<16x8xf32>, vector<16x8xf32>, vector<16x8xf32>, vector<16x8xf32> -> vector<16x32xf32>
    %c0_8 = arith.constant 0 : index
    %c0_9 = arith.constant 0 : index
    %52 = vector.load %arg3[%c0_8, %c0_9] : memref<32x32xf32, #tpu.memory_space<vmem>>, vector<32x32xf32>
    %cst_10 = arith.constant dense<0.000000e+00> : vector<16x32xf32>
    %53 = tpu.matmul %51, %52, %cst_10 {dimension_numbers = #tpu.dot_dimension_numbers<[1], [0], [0], [1], [0, 0, 1, 1], [], []>} : vector<16x32xf32>, vector<32x32xf32>, vector<16x32xf32> -> vector<16x32xf32>
    %c0_11 = arith.constant 0 : index
    %c0_12 = arith.constant 0 : index
    %54 = vector.load %arg4[%c0_11, %c0_12] : memref<1x32xf32, #tpu.memory_space<vmem>>, vector<1x32xf32>
    %55 = vector.broadcast %54 : vector<1x32xf32> to vector<16x32xf32>
    %56 = arith.addf %53, %55 : vector<16x32xf32>
    %c0_13 = arith.constant 0 : index
    %c0_14 = arith.constant 0 : index
    %57 = vector.load %arg5[%c0_13, %c0_14] : memref<16x32xf32, #tpu.memory_space<vmem>>, vector<16x32xf32>
    tpu.vector_store %arg5[%c0_13, %c0_14], %56 {strides = array<i32>} : memref<16x32xf32, #tpu.memory_space<vmem>>, vector<16x32xf32>,
    return
  }
  func.func @transform_0(%arg0: i32) -> (i32, i32) {
    %c0_i32 = arith.constant 0 : i32
    %c0_i32_0 = arith.constant 0 : i32
    return %arg0, %c0_i32 : i32, i32
  }
  func.func @transform_1(%arg0: i32) -> (i32, i32) {
    %c0_i32 = arith.constant 0 : i32
    %c0_i32_0 = arith.constant 0 : i32
    %c0_i32_1 = arith.constant 0 : i32
    return %c0_i32, %c0_i32_0 : i32, i32
  }
  func.func @transform_2(%arg0: i32) -> (i32, i32) {
    %c0_i32 = arith.constant 0 : i32
    %c0_i32_0 = arith.constant 0 : i32
    %c0_i32_1 = arith.constant 0 : i32
    return %c0_i32, %c0_i32_0 : i32, i32
  }
  func.func @transform_3(%arg0: i32) -> (i32, i32) {
    %c0_i32 = arith.constant 0 : i32
    %c0_i32_0 = arith.constant 0 : i32
    %c0_i32_1 = arith.constant 0 : i32
    return %c0_i32, %c0_i32_0 : i32, i32
  }
  func.func @transform_4(%arg0: i32) -> (i32, i32) {
    %c0_i32 = arith.constant 0 : i32
    %c0_i32_0 = arith.constant 0 : i32
    return %arg0, %c0_i32 : i32, i32
  }
}

</mosaic_0001>

<llo_original>
// kernel: tpu_custom_call.1
$region0: #{tpu_custom_call.1}
  #allocation0 [shape = 'u32[]', space=smem, size = 0x4, offset = 0x4, fixed_abs, tag = 'smem constant byte address 0x4 - core index']
  #allocation1 [shape = 'u32[72,128]{1,0:T(1,128)}', space=vmem, size = 0x9000, scoped, tag = 'internal scratch']
  %s0 = inlined_call_operand.hbm [shape: f32[16,32], index: 0, kind: input, shape index: {}]
  %s1 = inlined_call_operand.hbm [shape: f32[32,96], index: 1, kind: input, shape index: {}]
  %s2 = inlined_call_operand.hbm [shape: f32[32,32], index: 2, kind: input, shape index: {}]
  %s3 = inlined_call_operand.vmem [shape: f32[1,32], index: 3, kind: input, shape index: {}]
  %s4 = inlined_call_operand.hbm [shape: f32[16,32], index: 4, kind: output, shape index: {}]
  %s5 = sld [smem:[#allocation0]]
  $region38: #{tpu_custom_call.1} parent=0
    _
  %s7 = ssub.s32 1, %s5
  %s8 = scalar_select 0, %s7, %s5
  $region1: #{tpu_custom_call.1} parent=0
    #allocation2 [shape = 'u8[8192]{0}', space=vmem, size = 0x2000, scoped, tag = 'input window, operand 0, single buffered']
    #allocation3 [shape = 's32[1]{0}', space=sflag, size = 0x4, scoped, tag = 'scoped memory for tpu_custom_call.1']
    #allocation4 [shape = 's32[1]{0}', space=sflag, size = 0x4, scoped, tag = 'scoped memory for tpu_custom_call.1']
    #allocation5 [shape = 'u8[16384]{0}', space=vmem, size = 0x4000, scoped, tag = 'input window, operand 1, single buffered']
    #allocation6 [shape = 's32[1]{0}', space=sflag, size = 0x4, scoped, tag = 'scoped memory for tpu_custom_call.1']
    #allocation7 [shape = 'u8[16384]{0}', space=vmem, size = 0x4000, scoped, tag = 'input window, operand 2, single buffered']
    #allocation8 [shape = 'u8[8192]{0}', space=vmem, size = 0x2000, scoped, tag = 'output window, operand 0, single buffered']
    %9 = vsyncpa [#allocation3], 0
    %10 = vsyncpa [#allocation6], 0
    %11 = vsyncpa [#allocation4], 0
    // Predicated region
    $region2: #{tpu_custom_call.1} parent=1 // pred_check
      _
    $region3: #{tpu_custom_call.1} parent=1 // pred_check_branch
      %13 = sbr.rel (0) target = $region5
    $region4: #{tpu_custom_call.1} parent=1 // pred_region
      %15 = vsyncadd [#allocation3], 0
      %s16 = sshll.u32 %s0, 4
      %s17 = int_to_ptr.hbm [resolvable:$true] %s16
      %s18 = sshll.u32 [#allocation2], 4
      %s19 = int_to_ptr.vmem [resolvable:$true] %s18
      %24 = dma.hbm_to_vmem [thread:$0]  %s17, 256, %s19, [#allocation3], 128, 128, 8
    $region5: #{tpu_custom_call.1} parent=1 // pred_fallthru
      _
    // Predicated region
    $region6: #{tpu_custom_call.1} parent=1 // pred_check
      _
    $region7: #{tpu_custom_call.1} parent=1 // pred_check_branch
      %26 = sbr.rel (0) target = $region9
    $region8: #{tpu_custom_call.1} parent=1 // pred_region
      %28 = vsyncadd [#allocation6], 0
      %s29 = sshll.u32 %s1, 4
      %s30 = int_to_ptr.hbm [resolvable:$true] %s29
      %s31 = sshll.u32 [#allocation5], 4
      %s32 = int_to_ptr.vmem [resolvable:$true] %s31
      %37 = dma.hbm_to_vmem [thread:$0]  %s30, 512, %s32, [#allocation6], 128, 128, 8
    $region9: #{tpu_custom_call.1} parent=1 // pred_fallthru
      _
    // Predicated region
    $region10: #{tpu_custom_call.1} parent=1 // pred_check
      _
    $region11: #{tpu_custom_call.1} parent=1 // pred_check_branch
      %39 = sbr.rel (0) target = $region13
    $region12: #{tpu_custom_call.1} parent=1 // pred_region
      %41 = vsyncadd [#allocation6], 0
      %s42 = sshll.u32 %s2, 4
      %s43 = int_to_ptr.hbm [resolvable:$true] %s42
      %s44 = sshll.u32 [#allocation7], 4
      %s45 = int_to_ptr.vmem [resolvable:$true] %s44
      %50 = dma.hbm_to_vmem [thread:$0]  %s43, 512, %s45, [#allocation6], 128, 128, 8
    $region13: #{tpu_custom_call.1} parent=1 // pred_fallthru
      _
    // Predicated region
    $region14: #{tpu_custom_call.1} parent=1 // pred_check
      _
    $region15: #{tpu_custom_call.1} parent=1 // pred_check_branch
      %52 = sbr.rel (0) target = $region17
    $region16: #{tpu_custom_call.1} parent=1 // pred_region
      _
    $region17: #{tpu_custom_call.1} parent=1 // pred_fallthru
      _
    // Predicated region
    $region18: #{tpu_custom_call.1} parent=1 // pred_check
      _
    $region19: #{tpu_custom_call.1} parent=1 // pred_check_branch
      %54 = sbr.rel (0) target = $region21
    $region20: #{tpu_custom_call.1} parent=1 // pred_region
      %56 = dma.done [#allocation3], 256
    $region21: #{tpu_custom_call.1} parent=1 // pred_fallthru
      _
    // Predicated region
    $region22: #{tpu_custom_call.1} parent=1 // pred_check
      _
    $region23: #{tpu_custom_call.1} parent=1 // pred_check_branch
      %58 = sbr.rel (0) target = $region25
    $region24: #{tpu_custom_call.1} parent=1 // pred_region
      %60 = dma.done [#allocation6], 512
    $region25: #{tpu_custom_call.1} parent=1 // pred_fallthru
      _
    // Predicated region
    $region26: #{tpu_custom_call.1} parent=1 // pred_check
      _
    $region27: #{tpu_custom_call.1} parent=1 // pred_check_branch
      %62 = sbr.rel (0) target = $region29
    $region28: #{tpu_custom_call.1} parent=1 // pred_region
      %64 = dma.done [#allocation6], 512
    $region29: #{tpu_custom_call.1} parent=1 // pred_fallthru
      _
    %v65 = vld [vmem:[#allocation2] sm:$0xff]
    %v66 = vld [vmem:[#allocation2 + $0x8] sm:$0xff]
    %v67 = vld [vmem:[#allocation5] sm:$0xff]
    %v68 = vld [vmem:[#allocation5 + $0x8] sm:$0xff]
    %v69 = vld [vmem:[#allocation5 + $0x10] sm:$0xff]
    %v70 = vld [vmem:[#allocation5 + $0x18] sm:$0xff]
    %vm71 = vcmask 261120
    %v73 = vsel %vm71, %v65, 0
    %v76 = vsel %vm71, %v66, 0
    %78 = vmatpush.msra.mxu0 0.0
    %79 = vmatpush.msra.mxu0 0.0
    %80 = vmatpush.msra.mxu0 0.0
    %81 = vmatpush.msra.mxu0 0.0
    %82 = vmatpush.msra.mxu0 0.0
    %83 = vmatpush.msra.mxu0 0.0
    %84 = vmatpush.msra.mxu0 0.0
    %85 = vmatpush.msra.mxu0 0.0
    %86 = vmatpush.msra.mxu0 0.0
    %87 = vmatpush.msra.mxu0 0.0
    %88 = vmatpush.msra.mxu0 0.0
    %89 = vmatpush.msra.mxu0 0.0
    %90 = vmatpush.msra.mxu0 %v70
    %91 = vmatpush.msra.mxu0 %v69
    %92 = vmatpush.msra.mxu0 %v68
    %93 = vmatpush.msra.mxu0 %v67
    %94 = vmatmul.f32.gmra.mxu0 %v73
    %v95 = vpop.f32.mrf.mxu0
    %v96 = vadd.f32 0.0, %v95
    %97 = vmatmul.f32.gmra.mxu0 %v76
    %v98 = vpop.f32.mrf.mxu0
    %v99 = vadd.f32 0.0, %v98
    %100 = vdwg.mxu0
    %103 = vrot.lane.b32.xlu0 %v96, 120
    %v104 = vpop.permute.xlu0 %103
    %105 = vrot.lane.b32.xlu0 %v99, 120
    %v106 = vpop.permute.xlu0 %105
    %109 = vrot.lane.b32.xlu0 %v96, 112
    %v110 = vpop.permute.xlu0 %109
    %111 = vrot.lane.b32.xlu0 %v99, 112
    %v112 = vpop.permute.xlu0 %111
    %115 = vrot.lane.b32.xlu0 %v96, 104
    %v116 = vpop.permute.xlu0 %115
    %117 = vrot.lane.b32.xlu0 %v99, 104
    %v118 = vpop.permute.xlu0 %117
    %v121 = vmul.f32 %v96, 0.35355338
    %v122 = vmul.f32 %v99, 0.35355338
    %v123 = vmul.f32 %v104, 0.35355338
    %v124 = vmul.f32 %v106, 0.35355338
    %v125 = vmul.f32 %v110, 0.35355338
    %v126 = vmul.f32 %v112, 0.35355338
    %v127 = vmul.f32 %v116, 0.35355338
    %v128 = vmul.f32 %v118, 0.35355338
    %129 = vrot.lane.b32.xlu0 %v96, 96
    %v130 = vpop.permute.xlu0 %129
    %vm131 = vcmask 64512
    %v133 = vsel %vm131, %v121, 0
    %v135 = vsel %vm131, %v130, 0
    %137 = vmatpush.xpose.msra.mxu0 0.0
    %138 = vmatpush.xpose.msra.mxu0 0.0
    %139 = vmatpush.xpose.msra.mxu0 0.0
    %140 = vmatpush.xpose.msra.mxu0 0.0
    %141 = vmatpush.xpose.msra.mxu0 0.0
    %142 = vmatpush.xpose.msra.mxu0 0.0
    %143 = vmatpush.xpose.msra.mxu0 0.0
    %144 = vmatpush.xpose.msra.mxu0 0.0
    %145 = vmatpush.xpose.msra.mxu0 0.0
    %146 = vmatpush.xpose.msra.mxu0 0.0
    %147 = vmatpush.xpose.msra.mxu0 0.0
    %148 = vmatpush.xpose.msra.mxu0 0.0
    %149 = vmatpush.xpose.msra.mxu0 0.0
    %150 = vmatpush.xpose.msra.mxu0 0.0
    %151 = vmatpush.xpose.msra.mxu0 0.0
    %152 = vmatpush.xpose.msra.mxu0 %v135
    %153 = vmatmul.f32.gmra.mxu0 %v133
    %v154 = vpop.f32.mrf.mxu0
    %v155 = vadd.f32 0.0, %v154
    %156 = vdwg.mxu0
    %157 = vrot.lane.b32.xlu0 %v99, 96
    %v158 = vpop.permute.xlu0 %157
    %v160 = vsel %vm131, %v122, 0
    %v162 = vsel %vm131, %v158, 0
    %164 = vmatpush.xpose.msra.mxu0 0.0
    %165 = vmatpush.xpose.msra.mxu0 0.0
    %166 = vmatpush.xpose.msra.mxu0 0.0
    %167 = vmatpush.xpose.msra.mxu0 0.0
    %168 = vmatpush.xpose.msra.mxu0 0.0
    %169 = vmatpush.xpose.msra.mxu0 0.0
    %170 = vmatpush.xpose.msra.mxu0 0.0
    %171 = vmatpush.xpose.msra.mxu0 0.0
    %172 = vmatpush.xpose.msra.mxu0 0.0
    %173 = vmatpush.xpose.msra.mxu0 0.0
    %174 = vmatpush.xpose.msra.mxu0 0.0
    %175 = vmatpush.xpose.msra.mxu0 0.0
    %176 = vmatpush.xpose.msra.mxu0 0.0
    %177 = vmatpush.xpose.msra.mxu0 0.0
    %178 = vmatpush.xpose.msra.mxu0 0.0
    %179 = vmatpush.xpose.msra.mxu0 %v162
    %180 = vmatmul.f32.gmra.mxu0 %v160
    %v181 = vpop.f32.mrf.mxu0
    %v182 = vadd.f32 0.0, %v181
    %183 = vdwg.mxu0
    %184 = vrot.lane.b32.xlu0 %v104, 96
    %v185 = vpop.permute.xlu0 %184
    %v187 = vsel %vm131, %v123, 0
    %v189 = vsel %vm131, %v185, 0
    %191 = vmatpush.xpose.msra.mxu0 0.0
    %192 = vmatpush.xpose.msra.mxu0 0.0
    %193 = vmatpush.xpose.msra.mxu0 0.0
    %194 = vmatpush.xpose.msra.mxu0 0.0
    %195 = vmatpush.xpose.msra.mxu0 0.0
    %196 = vmatpush.xpose.msra.mxu0 0.0
    %197 = vmatpush.xpose.msra.mxu0 0.0
    %198 = vmatpush.xpose.msra.mxu0 0.0
    %199 = vmatpush.xpose.msra.mxu0 0.0
    %200 = vmatpush.xpose.msra.mxu0 0.0
    %201 = vmatpush.xpose.msra.mxu0 0.0
    %202 = vmatpush.xpose.msra.mxu0 0.0
    %203 = vmatpush.xpose.msra.mxu0 0.0
    %204 = vmatpush.xpose.msra.mxu0 0.0
    %205 = vmatpush.xpose.msra.mxu0 0.0
    %206 = vmatpush.xpose.msra.mxu0 %v189
    %207 = vmatmul.f32.gmra.mxu0 %v187
    %v208 = vpop.f32.mrf.mxu0
    %v209 = vadd.f32 0.0, %v208
    %210 = vdwg.mxu0
    %211 = vrot.lane.b32.xlu0 %v106, 96
    %v212 = vpop.permute.xlu0 %211
    %v214 = vsel %vm131, %v124, 0
    %v216 = vsel %vm131, %v212, 0
    %218 = vmatpush.xpose.msra.mxu0 0.0
    %219 = vmatpush.xpose.msra.mxu0 0.0
    %220 = vmatpush.xpose.msra.mxu0 0.0
    %221 = vmatpush.xpose.msra.mxu0 0.0
    %222 = vmatpush.xpose.msra.mxu0 0.0
    %223 = vmatpush.xpose.msra.mxu0 0.0
    %224 = vmatpush.xpose.msra.mxu0 0.0
    %225 = vmatpush.xpose.msra.mxu0 0.0
    %226 = vmatpush.xpose.msra.mxu0 0.0
    %227 = vmatpush.xpose.msra.mxu0 0.0
    %228 = vmatpush.xpose.msra.mxu0 0.0
    %229 = vmatpush.xpose.msra.mxu0 0.0
    %230 = vmatpush.xpose.msra.mxu0 0.0
    %231 = vmatpush.xpose.msra.mxu0 0.0
    %232 = vmatpush.xpose.msra.mxu0 0.0
    %233 = vmatpush.xpose.msra.mxu0 %v216
    %234 = vmatmul.f32.gmra.mxu0 %v214
    %v235 = vpop.f32.mrf.mxu0
    %v236 = vadd.f32 0.0, %v235
    %237 = vdwg.mxu0
    %238 = vrot.lane.b32.xlu0 %v110, 96
    %v239 = vpop.permute.xlu0 %238
    %v241 = vsel %vm131, %v125, 0
    %v243 = vsel %vm131, %v239, 0
    %245 = vmatpush.xpose.msra.mxu0 0.0
    %246 = vmatpush.xpose.msra.mxu0 0.0
    %247 = vmatpush.xpose.msra.mxu0 0.0
    %248 = vmatpush.xpose.msra.mxu0 0.0
    %249 = vmatpush.xpose.msra.mxu0 0.0
    %250 = vmatpush.xpose.msra.mxu0 0.0
    %251 = vmatpush.xpose.msra.mxu0 0.0
    %252 = vmatpush.xpose.msra.mxu0 0.0
    %253 = vmatpush.xpose.msra.mxu0 0.0
    %254 = vmatpush.xpose.msra.mxu0 0.0
    %255 = vmatpush.xpose.msra.mxu0 0.0
    %256 = vmatpush.xpose.msra.mxu0 0.0
    %257 = vmatpush.xpose.msra.mxu0 0.0
    %258 = vmatpush.xpose.msra.mxu0 0.0
    %259 = vmatpush.xpose.msra.mxu0 0.0
    %260 = vmatpush.xpose.msra.mxu0 %v243
    %261 = vmatmul.f32.gmra.mxu0 %v241
    %v262 = vpop.f32.mrf.mxu0
    %v263 = vadd.f32 0.0, %v262
    %264 = vdwg.mxu0
    %265 = vrot.lane.b32.xlu0 %v112, 96
    %v266 = vpop.permute.xlu0 %265
    %v268 = vsel %vm131, %v126, 0
    %v270 = vsel %vm131, %v266, 0
    %272 = vmatpush.xpose.msra.mxu0 0.0
    %273 = vmatpush.xpose.msra.mxu0 0.0
    %274 = vmatpush.xpose.msra.mxu0 0.0
    %275 = vmatpush.xpose.msra.mxu0 0.0
    %276 = vmatpush.xpose.msra.mxu0 0.0
    %277 = vmatpush.xpose.msra.mxu0 0.0
    %278 = vmatpush.xpose.msra.mxu0 0.0
    %279 = vmatpush.xpose.msra.mxu0 0.0
    %280 = vmatpush.xpose.msra.mxu0 0.0
    %281 = vmatpush.xpose.msra.mxu0 0.0
    %282 = vmatpush.xpose.msra.mxu0 0.0
    %283 = vmatpush.xpose.msra.mxu0 0.0
    %284 = vmatpush.xpose.msra.mxu0 0.0
    %285 = vmatpush.xpose.msra.mxu0 0.0
    %286 = vmatpush.xpose.msra.mxu0 0.0
    %287 = vmatpush.xpose.msra.mxu0 %v270
    %288 = vmatmul.f32.gmra.mxu0 %v268
    %v289 = vpop.f32.mrf.mxu0
    %v290 = vadd.f32 0.0, %v289
    %291 = vdwg.mxu0
    %292 = vrot.lane.b32.xlu0 %v116, 96
    %v293 = vpop.permute.xlu0 %292
    %v295 = vsel %vm131, %v127, 0
    %v297 = vsel %vm131, %v293, 0
    %299 = vmatpush.xpose.msra.mxu0 0.0
    %300 = vmatpush.xpose.msra.mxu0 0.0
    %301 = vmatpush.xpose.msra.mxu0 0.0
    %302 = vmatpush.xpose.msra.mxu0 0.0
    %303 = vmatpush.xpose.msra.mxu0 0.0
    %304 = vmatpush.xpose.msra.mxu0 0.0
    %305 = vmatpush.xpose.msra.mxu0 0.0
    %306 = vmatpush.xpose.msra.mxu0 0.0
    %307 = vmatpush.xpose.msra.mxu0 0.0
    %308 = vmatpush.xpose.msra.mxu0 0.0
    %309 = vmatpush.xpose.msra.mxu0 0.0
    %310 = vmatpush.xpose.msra.mxu0 0.0
    %311 = vmatpush.xpose.msra.mxu0 0.0
    %312 = vmatpush.xpose.msra.mxu0 0.0
    %313 = vmatpush.xpose.msra.mxu0 0.0
    %314 = vmatpush.xpose.msra.mxu0 %v297
    %315 = vmatmul.f32.gmra.mxu0 %v295
    %v316 = vpop.f32.mrf.mxu0
    %v317 = vadd.f32 0.0, %v316
    %318 = vdwg.mxu0
    %319 = vrot.lane.b32.xlu0 %v118, 96
    %v320 = vpop.permute.xlu0 %319
    %v322 = vsel %vm131, %v128, 0
    %v324 = vsel %vm131, %v320, 0
    %326 = vmatpush.xpose.msra.mxu0 0.0
    %327 = vmatpush.xpose.msra.mxu0 0.0
    %328 = vmatpush.xpose.msra.mxu0 0.0
    %329 = vmatpush.xpose.msra.mxu0 0.0
    %330 = vmatpush.xpose.msra.mxu0 0.0
    %331 = vmatpush.xpose.msra.mxu0 0.0
    %332 = vmatpush.xpose.msra.mxu0 0.0
    %333 = vmatpush.xpose.msra.mxu0 0.0
    %334 = vmatpush.xpose.msra.mxu0 0.0
    %335 = vmatpush.xpose.msra.mxu0 0.0
    %336 = vmatpush.xpose.msra.mxu0 0.0
    %337 = vmatpush.xpose.msra.mxu0 0.0
    %338 = vmatpush.xpose.msra.mxu0 0.0
    %339 = vmatpush.xpose.msra.mxu0 0.0
    %340 = vmatpush.xpose.msra.mxu0 0.0
    %341 = vmatpush.xpose.msra.mxu0 %v324
    %342 = vmatmul.f32.gmra.mxu0 %v322
    %v343 = vpop.f32.mrf.mxu0
    %v344 = vadd.f32 0.0, %v343
    %345 = vdwg.mxu0
    %v346 = vsel %vm131, %v155, -inf
    %347 = vmax.xlane.f32.xlu0 %v346
    %v348 = vpop.xlane.xlu0 %347
    %v349 = vsel %vm131, %v182, -inf
    %350 = vmax.xlane.f32.xlu0 %v349
    %v351 = vpop.xlane.xlu0 %350
    %v352 = vsel %vm131, %v209, -inf
    %353 = vmax.xlane.f32.xlu0 %v352
    %v354 = vpop.xlane.xlu0 %353
    %v355 = vsel %vm131, %v236, -inf
    %356 = vmax.xlane.f32.xlu0 %v355
    %v357 = vpop.xlane.xlu0 %356
    %v358 = vsel %vm131, %v263, -inf
    %359 = vmax.xlane.f32.xlu0 %v358
    %v360 = vpop.xlane.xlu0 %359
    %v361 = vsel %vm131, %v290, -inf
    %362 = vmax.xlane.f32.xlu0 %v361
    %v363 = vpop.xlane.xlu0 %362
    %v364 = vsel %vm131, %v317, -inf
    %365 = vmax.xlane.f32.xlu0 %v364
    %v366 = vpop.xlane.xlu0 %365
    %v367 = vsel %vm131, %v344, -inf
    %368 = vmax.xlane.f32.xlu0 %v367
    %v369 = vpop.xlane.xlu0 %368
    %v370 = vsub.f32 %v155, %v348
    %v371 = vsub.f32 %v182, %v351
    %v372 = vsub.f32 %v209, %v354
    %v373 = vsub.f32 %v236, %v357
    %v374 = vsub.f32 %v263, %v360
    %v375 = vsub.f32 %v290, %v363
    %v376 = vsub.f32 %v317, %v366
    %v377 = vsub.f32 %v344, %v369
    %v378 = vmul.f32 %v370, 1.442695
    %v379 = vpow.pop %v378
    %v380 = vmul.f32 %v371, 1.442695
    %v381 = vpow.pop %v380
    %v382 = vmul.f32 %v372, 1.442695
    %v383 = vpow.pop %v382
    %v384 = vmul.f32 %v373, 1.442695
    %v385 = vpow.pop %v384
    %v386 = vmul.f32 %v374, 1.442695
    %v387 = vpow.pop %v386
    %v388 = vmul.f32 %v375, 1.442695
    %v389 = vpow.pop %v388
    %v390 = vmul.f32 %v376, 1.442695
    %v391 = vpow.pop %v390
    %v392 = vmul.f32 %v377, 1.442695
    %v393 = vpow.pop %v392
    %v394 = vsel %vm131, %v379, 0.0
    %395 = vadd.xlane.f32.xlu0 %v394
    %v396 = vpop.xlane.xlu0 %395
    %v397 = vsel %vm131, %v381, 0.0
    %398 = vadd.xlane.f32.xlu0 %v397
    %v399 = vpop.xlane.xlu0 %398
    %v400 = vsel %vm131, %v383, 0.0
    %401 = vadd.xlane.f32.xlu0 %v400
    %v402 = vpop.xlane.xlu0 %401
    %v403 = vsel %vm131, %v385, 0.0
    %404 = vadd.xlane.f32.xlu0 %v403
    %v405 = vpop.xlane.xlu0 %404
    %v406 = vsel %vm131, %v387, 0.0
    %407 = vadd.xlane.f32.xlu0 %v406
    %v408 = vpop.xlane.xlu0 %407
    %v409 = vsel %vm131, %v389, 0.0
    %410 = vadd.xlane.f32.xlu0 %v409
    %v411 = vpop.xlane.xlu0 %410
    %v412 = vsel %vm131, %v391, 0.0
    %413 = vadd.xlane.f32.xlu0 %v412
    %v414 = vpop.xlane.xlu0 %413
    %v415 = vsel %vm131, %v393, 0.0
    %416 = vadd.xlane.f32.xlu0 %v415
    %v417 = vpop.xlane.xlu0 %416
    %v418 = vrcp.pop %v396
    %v419 = vmul.f32 %v396, %v418
    %v420 = vsub.f32 1.0, %v419
    %v421 = vmul.f32 %v418, %v420
    %v422 = vadd.f32 %v418, %v421
    %vm423 = vweird.f32 %v396
    %vm424 = vweird.f32 %v418
    %vm425 = vmor %vm423, %vm424
    %v426 = vsel %vm425, %v418, %v422
    %v427 = vand.u32 2147483647, %v396
    %vm428 = vcmp.eq.f32.partialorder %v427, 8.507059e+37
    %v429 = vand.u32 %v396, 2147483648
    %v430 = vor.u32 1.1754944e-38, %v429
    %v431 = vsel %vm428, %v430, %v426
    %v432 = vmul.f32 %v379, %v431
    %v433 = vrcp.pop %v399
    %v434 = vmul.f32 %v399, %v433
    %v435 = vsub.f32 1.0, %v434
    %v436 = vmul.f32 %v433, %v435
    %v437 = vadd.f32 %v433, %v436
    %vm438 = vweird.f32 %v399
    %vm439 = vweird.f32 %v433
    %vm440 = vmor %vm438, %vm439
    %v441 = vsel %vm440, %v433, %v437
    %v442 = vand.u32 2147483647, %v399
    %vm443 = vcmp.eq.f32.partialorder %v442, 8.507059e+37
    %v444 = vand.u32 %v399, 2147483648
    %v445 = vor.u32 1.1754944e-38, %v444
    %v446 = vsel %vm443, %v445, %v441
    %v447 = vmul.f32 %v381, %v446
    %v448 = vrcp.pop %v402
    %v449 = vmul.f32 %v402, %v448
    %v450 = vsub.f32 1.0, %v449
    %v451 = vmul.f32 %v448, %v450
    %v452 = vadd.f32 %v448, %v451
    %vm453 = vweird.f32 %v402
    %vm454 = vweird.f32 %v448
    %vm455 = vmor %vm453, %vm454
    %v456 = vsel %vm455, %v448, %v452
    %v457 = vand.u32 2147483647, %v402
    %vm458 = vcmp.eq.f32.partialorder %v457, 8.507059e+37
    %v459 = vand.u32 %v402, 2147483648
    %v460 = vor.u32 1.1754944e-38, %v459
    %v461 = vsel %vm458, %v460, %v456
    %v462 = vmul.f32 %v383, %v461
    %v463 = vrcp.pop %v405
    %v464 = vmul.f32 %v405, %v463
    %v465 = vsub.f32 1.0, %v464
    %v466 = vmul.f32 %v463, %v465
    %v467 = vadd.f32 %v463, %v466
    %vm468 = vweird.f32 %v405
    %vm469 = vweird.f32 %v463
    %vm470 = vmor %vm468, %vm469
    %v471 = vsel %vm470, %v463, %v467
    %v472 = vand.u32 2147483647, %v405
    %vm473 = vcmp.eq.f32.partialorder %v472, 8.507059e+37
    %v474 = vand.u32 %v405, 2147483648
    %v475 = vor.u32 1.1754944e-38, %v474
    %v476 = vsel %vm473, %v475, %v471
    %v477 = vmul.f32 %v385, %v476
    %v478 = vrcp.pop %v408
    %v479 = vmul.f32 %v408, %v478
    %v480 = vsub.f32 1.0, %v479
    %v481 = vmul.f32 %v478, %v480
    %v482 = vadd.f32 %v478, %v481
    %vm483 = vweird.f32 %v408
    %vm484 = vweird.f32 %v478
    %vm485 = vmor %vm483, %vm484
    %v486 = vsel %vm485, %v478, %v482
    %v487 = vand.u32 2147483647, %v408
    %vm488 = vcmp.eq.f32.partialorder %v487, 8.507059e+37
    %v489 = vand.u32 %v408, 2147483648
    %v490 = vor.u32 1.1754944e-38, %v489
    %v491 = vsel %vm488, %v490, %v486
    %v492 = vmul.f32 %v387, %v491
    %v493 = vrcp.pop %v411
    %v494 = vmul.f32 %v411, %v493
    %v495 = vsub.f32 1.0, %v494
    %v496 = vmul.f32 %v493, %v495
    %v497 = vadd.f32 %v493, %v496
    %vm498 = vweird.f32 %v411
    %vm499 = vweird.f32 %v493
    %vm500 = vmor %vm498, %vm499
    %v501 = vsel %vm500, %v493, %v497
    %v502 = vand.u32 2147483647, %v411
    %vm503 = vcmp.eq.f32.partialorder %v502, 8.507059e+37
    %v504 = vand.u32 %v411, 2147483648
    %v505 = vor.u32 1.1754944e-38, %v504
    %v506 = vsel %vm503, %v505, %v501
    %v507 = vmul.f32 %v389, %v506
    %v508 = vrcp.pop %v414
    %v509 = vmul.f32 %v414, %v508
    %v510 = vsub.f32 1.0, %v509
    %v511 = vmul.f32 %v508, %v510
    %v512 = vadd.f32 %v508, %v511
    %vm513 = vweird.f32 %v414
    %vm514 = vweird.f32 %v508
    %vm515 = vmor %vm513, %vm514
    %v516 = vsel %vm515, %v508, %v512
    %v517 = vand.u32 2147483647, %v414
    %vm518 = vcmp.eq.f32.partialorder %v517, 8.507059e+37
    %v519 = vand.u32 %v414, 2147483648
    %v520 = vor.u32 1.1754944e-38, %v519
    %v521 = vsel %vm518, %v520, %v516
    %v522 = vmul.f32 %v391, %v521
    %v523 = vrcp.pop %v417
    %v524 = vmul.f32 %v417, %v523
    %v525 = vsub.f32 1.0, %v524
    %v526 = vmul.f32 %v523, %v525
    %v527 = vadd.f32 %v523, %v526
    %vm528 = vweird.f32 %v417
    %vm529 = vweird.f32 %v523
    %vm530 = vmor %vm528, %vm529
    %v531 = vsel %vm530, %v523, %v527
    %v532 = vand.u32 2147483647, %v417
    %vm533 = vcmp.eq.f32.partialorder %v532, 8.507059e+37
    %v534 = vand.u32 %v417, 2147483648
    %v535 = vor.u32 1.1754944e-38, %v534
    %v536 = vsel %vm533, %v535, %v531
    %v537 = vmul.f32 %v393, %v536
    %538 = vrot.lane.b32.xlu0 %v96, 64
    %v539 = vpop.permute.xlu0 %538
    %v542 = vsel %vm131, %v432, 0
    %544 = vmatpush.msra.mxu0 0.0
    %545 = vmatpush.msra.mxu0 0.0
    %546 = vmatpush.msra.mxu0 0.0
    %547 = vmatpush.msra.mxu0 0.0
    %548 = vmatpush.msra.mxu0 0.0
    %549 = vmatpush.msra.mxu0 0.0
    %550 = vmatpush.msra.mxu0 0.0
    %551 = vmatpush.msra.mxu0 0.0
    %552 = vmatpush.msra.mxu0 0.0
    %553 = vmatpush.msra.mxu0 0.0
    %554 = vmatpush.msra.mxu0 0.0
    %555 = vmatpush.msra.mxu0 0.0
    %556 = vmatpush.msra.mxu0 0.0
    %557 = vmatpush.msra.mxu0 0.0
    %558 = vmatpush.msra.mxu0 0.0
    %559 = vmatpush.msra.mxu0 %v539
    %560 = vmatmul.f32.gmra.mxu0 %v542
    %v561 = vpop.f32.mrf.mxu0
    %v562 = vadd.f32 0.0, %v561
    %563 = vdwg.mxu0
    %564 = vrot.lane.b32.xlu0 %v99, 64
    %v565 = vpop.permute.xlu0 %564
    %v568 = vsel %vm131, %v447, 0
    %570 = vmatpush.msra.mxu0 0.0
    %571 = vmatpush.msra.mxu0 0.0
    %572 = vmatpush.msra.mxu0 0.0
    %573 = vmatpush.msra.mxu0 0.0
    %574 = vmatpush.msra.mxu0 0.0
    %575 = vmatpush.msra.mxu0 0.0
    %576 = vmatpush.msra.mxu0 0.0
    %577 = vmatpush.msra.mxu0 0.0
    %578 = vmatpush.msra.mxu0 0.0
    %579 = vmatpush.msra.mxu0 0.0
    %580 = vmatpush.msra.mxu0 0.0
    %581 = vmatpush.msra.mxu0 0.0
    %582 = vmatpush.msra.mxu0 0.0
    %583 = vmatpush.msra.mxu0 0.0
    %584 = vmatpush.msra.mxu0 0.0
    %585 = vmatpush.msra.mxu0 %v565
    %586 = vmatmul.f32.gmra.mxu0 %v568
    %v587 = vpop.f32.mrf.mxu0
    %v588 = vadd.f32 0.0, %v587
    %589 = vdwg.mxu0
    %590 = vrot.lane.b32.xlu0 %v104, 64
    %v591 = vpop.permute.xlu0 %590
    %v594 = vsel %vm131, %v462, 0
    %596 = vmatpush.msra.mxu0 0.0
    %597 = vmatpush.msra.mxu0 0.0
    %598 = vmatpush.msra.mxu0 0.0
    %599 = vmatpush.msra.mxu0 0.0
    %600 = vmatpush.msra.mxu0 0.0
    %601 = vmatpush.msra.mxu0 0.0
    %602 = vmatpush.msra.mxu0 0.0
    %603 = vmatpush.msra.mxu0 0.0
    %604 = vmatpush.msra.mxu0 0.0
    %605 = vmatpush.msra.mxu0 0.0
    %606 = vmatpush.msra.mxu0 0.0
    %607 = vmatpush.msra.mxu0 0.0
    %608 = vmatpush.msra.mxu0 0.0
    %609 = vmatpush.msra.mxu0 0.0
    %610 = vmatpush.msra.mxu0 0.0
    %611 = vmatpush.msra.mxu0 %v591
    %612 = vmatmul.f32.gmra.mxu0 %v594
    %v613 = vpop.f32.mrf.mxu0
    %v614 = vadd.f32 0.0, %v613
    %615 = vdwg.mxu0
    %616 = vrot.lane.b32.xlu0 %v106, 64
    %v617 = vpop.permute.xlu0 %616
    %v620 = vsel %vm131, %v477, 0
    %622 = vmatpush.msra.mxu0 0.0
    %623 = vmatpush.msra.mxu0 0.0
    %624 = vmatpush.msra.mxu0 0.0
    %625 = vmatpush.msra.mxu0 0.0
    %626 = vmatpush.msra.mxu0 0.0
    %627 = vmatpush.msra.mxu0 0.0
    %628 = vmatpush.msra.mxu0 0.0
    %629 = vmatpush.msra.mxu0 0.0
    %630 = vmatpush.msra.mxu0 0.0
    %631 = vmatpush.msra.mxu0 0.0
    %632 = vmatpush.msra.mxu0 0.0
    %633 = vmatpush.msra.mxu0 0.0
    %634 = vmatpush.msra.mxu0 0.0
    %635 = vmatpush.msra.mxu0 0.0
    %636 = vmatpush.msra.mxu0 0.0
    %637 = vmatpush.msra.mxu0 %v617
    %638 = vmatmul.f32.gmra.mxu0 %v620
    %v639 = vpop.f32.mrf.mxu0
    %v640 = vadd.f32 0.0, %v639
    %641 = vdwg.mxu0
    %642 = vrot.lane.b32.xlu0 %v110, 64
    %v643 = vpop.permute.xlu0 %642
    %v646 = vsel %vm131, %v492, 0
    %648 = vmatpush.msra.mxu0 0.0
    %649 = vmatpush.msra.mxu0 0.0
    %650 = vmatpush.msra.mxu0 0.0
    %651 = vmatpush.msra.mxu0 0.0
    %652 = vmatpush.msra.mxu0 0.0
    %653 = vmatpush.msra.mxu0 0.0
    %654 = vmatpush.msra.mxu0 0.0
    %655 = vmatpush.msra.mxu0 0.0
    %656 = vmatpush.msra.mxu0 0.0
    %657 = vmatpush.msra.mxu0 0.0
    %658 = vmatpush.msra.mxu0 0.0
    %659 = vmatpush.msra.mxu0 0.0
    %660 = vmatpush.msra.mxu0 0.0
    %661 = vmatpush.msra.mxu0 0.0
    %662 = vmatpush.msra.mxu0 0.0
    %663 = vmatpush.msra.mxu0 %v643
    %664 = vmatmul.f32.gmra.mxu0 %v646
    %v665 = vpop.f32.mrf.mxu0
    %v666 = vadd.f32 0.0, %v665
    %667 = vdwg.mxu0
    %668 = vrot.lane.b32.xlu0 %v112, 64
    %v669 = vpop.permute.xlu0 %668
    %v672 = vsel %vm131, %v507, 0
    %674 = vmatpush.msra.mxu0 0.0
    %675 = vmatpush.msra.mxu0 0.0
    %676 = vmatpush.msra.mxu0 0.0
    %677 = vmatpush.msra.mxu0 0.0
    %678 = vmatpush.msra.mxu0 0.0
    %679 = vmatpush.msra.mxu0 0.0
    %680 = vmatpush.msra.mxu0 0.0
    %681 = vmatpush.msra.mxu0 0.0
    %682 = vmatpush.msra.mxu0 0.0
    %683 = vmatpush.msra.mxu0 0.0
    %684 = vmatpush.msra.mxu0 0.0
    %685 = vmatpush.msra.mxu0 0.0
    %686 = vmatpush.msra.mxu0 0.0
    %687 = vmatpush.msra.mxu0 0.0
    %688 = vmatpush.msra.mxu0 0.0
    %689 = vmatpush.msra.mxu0 %v669
    %690 = vmatmul.f32.gmra.mxu0 %v672
    %v691 = vpop.f32.mrf.mxu0
    %v692 = vadd.f32 0.0, %v691
    %693 = vdwg.mxu0
    %694 = vrot.lane.b32.xlu0 %v116, 64
    %v695 = vpop.permute.xlu0 %694
    %v698 = vsel %vm131, %v522, 0
    %700 = vmatpush.msra.mxu0 0.0
    %701 = vmatpush.msra.mxu0 0.0
    %702 = vmatpush.msra.mxu0 0.0
    %703 = vmatpush.msra.mxu0 0.0
    %704 = vmatpush.msra.mxu0 0.0
    %705 = vmatpush.msra.mxu0 0.0
    %706 = vmatpush.msra.mxu0 0.0
    %707 = vmatpush.msra.mxu0 0.0
    %708 = vmatpush.msra.mxu0 0.0
    %709 = vmatpush.msra.mxu0 0.0
    %710 = vmatpush.msra.mxu0 0.0
    %711 = vmatpush.msra.mxu0 0.0
    %712 = vmatpush.msra.mxu0 0.0
    %713 = vmatpush.msra.mxu0 0.0
    %714 = vmatpush.msra.mxu0 0.0
    %715 = vmatpush.msra.mxu0 %v695
    %716 = vmatmul.f32.gmra.mxu0 %v698
    %v717 = vpop.f32.mrf.mxu0
    %v718 = vadd.f32 0.0, %v717
    %719 = vdwg.mxu0
    %720 = vrot.lane.b32.xlu0 %v118, 64
    %v721 = vpop.permute.xlu0 %720
    %v724 = vsel %vm131, %v537, 0
    %726 = vmatpush.msra.mxu0 0.0
    %727 = vmatpush.msra.mxu0 0.0
    %728 = vmatpush.msra.mxu0 0.0
    %729 = vmatpush.msra.mxu0 0.0
    %730 = vmatpush.msra.mxu0 0.0
    %731 = vmatpush.msra.mxu0 0.0
    %732 = vmatpush.msra.mxu0 0.0
    %733 = vmatpush.msra.mxu0 0.0
    %734 = vmatpush.msra.mxu0 0.0
    %735 = vmatpush.msra.mxu0 0.0
    %736 = vmatpush.msra.mxu0 0.0
    %737 = vmatpush.msra.mxu0 0.0
    %738 = vmatpush.msra.mxu0 0.0
    %739 = vmatpush.msra.mxu0 0.0
    %740 = vmatpush.msra.mxu0 0.0
    %741 = vmatpush.msra.mxu0 %v721
    %742 = vmatmul.f32.gmra.mxu0 %v724
    %v743 = vpop.f32.mrf.mxu0
    %v744 = vadd.f32 0.0, %v743
    %745 = vdwg.mxu0
    %748 = vrot.lane.b32.xlu0 %v614, 8
    %v749 = vpop.permute.xlu0 %748
    %750 = vrot.lane.b32.xlu0 %v640, 8
    %v751 = vpop.permute.xlu0 %750
    %756 = vrot.lane.b32.xlu0 %v666, 16
    %v757 = vpop.permute.xlu0 %756
    %758 = vrot.lane.b32.xlu0 %v692, 16
    %v759 = vpop.permute.xlu0 %758
    %764 = vrot.lane.b32.xlu0 %v718, 24
    %v765 = vpop.permute.xlu0 %764
    %766 = vrot.lane.b32.xlu0 %v744, 24
    %v767 = vpop.permute.xlu0 %766
    %v770 = vsel %vm131, %v562, %v749
    %v771 = vsel %vm131, %v588, %v751
    %vm772 = vcmask 130048
    %v773 = vsel %vm772, %v770, %v757
    %v774 = vsel %vm772, %v771, %v759
    %vm775 = vcmask 195584
    %v776 = vsel %vm775, %v773, %v765
    %v777 = vsel %vm775, %v774, %v767
    %v778 = vld [vmem:[#allocation7] sm:$0xff]
    %v779 = vld [vmem:[#allocation7 + $0x8] sm:$0xff]
    %v780 = vld [vmem:[#allocation7 + $0x10] sm:$0xff]
    %v781 = vld [vmem:[#allocation7 + $0x18] sm:$0xff]
    %v782 = vld [vmem:[%s3] sm:$0x1]
    %v784 = vperm.slane %v782, 0
    %v787 = vsel %vm71, %v776, 0
    %v790 = vsel %vm71, %v777, 0
    %792 = vmatpush.msra.mxu0 0.0
    %793 = vmatpush.msra.mxu0 0.0
    %794 = vmatpush.msra.mxu0 0.0
    %795 = vmatpush.msra.mxu0 0.0
    %796 = vmatpush.msra.mxu0 0.0
    %797 = vmatpush.msra.mxu0 0.0
    %798 = vmatpush.msra.mxu0 0.0
    %799 = vmatpush.msra.mxu0 0.0
    %800 = vmatpush.msra.mxu0 0.0
    %801 = vmatpush.msra.mxu0 0.0
    %802 = vmatpush.msra.mxu0 0.0
    %803 = vmatpush.msra.mxu0 0.0
    %804 = vmatpush.msra.mxu0 %v781
    %805 = vmatpush.msra.mxu0 %v780
    %806 = vmatpush.msra.mxu0 %v779
    %807 = vmatpush.msra.mxu0 %v778
    %808 = vmatmul.f32.gmra.mxu0 %v787
    %v809 = vpop.f32.mrf.mxu0
    %v810 = vadd.f32 %v784, %v809
    %811 = vmatmul.f32.gmra.mxu0 %v790
    %v812 = vpop.f32.mrf.mxu0
    %v813 = vadd.f32 %v784, %v812
    %814 = vdwg.mxu0
    %815 = vst.msk [vmem:[#allocation8] sm:$0xff] %vm71, %v810
    %816 = vst.msk [vmem:[#allocation8 + $0x8] sm:$0xff] %vm71, %v813
    // Predicated region
    $region30: #{tpu_custom_call.1} parent=1 // pred_check
      _
    $region31: #{tpu_custom_call.1} parent=1 // pred_check_branch
      %818 = sbr.rel (0) target = $region33
    $region32: #{tpu_custom_call.1} parent=1 // pred_region
      %820 = vsyncadd [#allocation4], 0
      %s821 = sshll.u32 [#allocation8], 4
      %s822 = int_to_ptr.vmem [resolvable:$true] %s821
      %s823 = sshll.u32 %s4, 4
      %s824 = int_to_ptr.hbm [resolvable:$true] %s823
      %829 = dma.vmem_to_hbm [thread:$0]  %s822, 256, %s824, [#allocation4], 128, 128, 8
    $region33: #{tpu_custom_call.1} parent=1 // pred_fallthru
      _
    // Predicated region
    $region34: #{tpu_custom_call.1} parent=1 // pred_check
      _
    $region35: #{tpu_custom_call.1} parent=1 // pred_check_branch
      %831 = sbr.rel (0) target = $region37
    $region36: #{tpu_custom_call.1} parent=1 // pred_region
      %833 = dma.done [#allocation4], 256
    $region37: #{tpu_custom_call.1} parent=1 // pred_fallthru
      _
    %834 = vsyncpa [#allocation3], 1
    %835 = vsyncpa [#allocation6], 1
    %836 = vsyncpa [#allocation4], 1

</llo_original>
